<compile_context>
chip_gen: v6e
topology: v6e:2x2x1
jax: 0.10.0
libtpu: 0.0.40
codegen_flags: <defaults>
</compile_context>

<pallas_src>
import math
import functools

import jax
import jax.numpy as jnp
from jax import lax
from jax.experimental import pallas as pl
from jax.experimental.pallas import tpu as pltpu


def _pe_flat_kernel(col_ref, o_ref, *, group, block_rows):
    """Write one lane-dense tile of the sinusoidal PE table.

    col_ref: (3, W) f32 resident input, W = group * dim
             row 0: freq(d)        = exp(-(d & ~1) * ln(1e4)/dim) per flat column
             row 1: pos_in_row(c)  = c // dim   (0 .. group-1), as float
             row 2: odd(d)         = d % 2, as float
    o_ref:   (block_rows, W) f32. Flat element (r, c) corresponds to
             position p = r*group + c//dim, feature d = c % dim.
    """
    cols = col_ref[...]                       # (3, W)
    freq = cols[0:1, :]                       # (1, W)
    pos_in_row = cols[1:2, :]                 # (1, W)
    odd = cols[2:3, :]                        # (1, W)

    r0 = pl.program_id(0) * block_rows
    r_col = lax.broadcasted_iota(jnp.int32, (block_rows, 1), 0) + r0
    base = (r_col * group).astype(jnp.float32)            # (block_rows, 1)

    pos = base + pos_in_row                   # exact integer positions in f32
    ang = pos * freq                          # single multiply, matches reference
    o_ref[...] = jnp.where(odd > 0.5, jnp.cos(ang), jnp.sin(ang))


def _choose_group(dim):
    """Pick positions-per-lane-row so W = group*dim is a multiple of 128."""
    if dim % 128 == 0:
        return 1
    g = math.lcm(dim, 128) // dim
    if g * dim <= 512:
        return g
    return 1  # fall back: last-dim equals full array extent (masked stores, still correct)


@functools.lru_cache(maxsize=None)
def _pe_table(dim, max_len):
    """Build (and cache) the (max_len, dim) float32 PE table with a Pallas kernel."""
    group = _choose_group(dim)
    W = group * dim

    # ---- per-column constants, computed once on the XLA side ----
    c = jnp.arange(W, dtype=jnp.int32)
    d = c % dim
    k2 = (d // 2 * 2).astype(jnp.float32)                        # even-floored d
    freq = jnp.exp(k2 * (-math.log(10000.0) / float(dim)))       # matches torch div_term
    pos_in_row = (c // dim).astype(jnp.float32)
    odd = (d % 2).astype(jnp.float32)
    cols = jnp.stack([freq, pos_in_row, odd], axis=0)            # (3, W)

    # ---- sequence tiling: ~4 MiB blocks, >=2 blocks when there is enough work ----
    rows = pl.cdiv(max_len, group)
    rows8 = ((rows + 7) // 8) * 8
    target_rows = max(8, ((4 << 20) // (W * 4)) // 8 * 8)
    if rows8 <= 8:
        block_rows = rows8
    else:
        half = max(8, ((rows8 + 15) // 16) * 8)    # ~half the rows, multiple of 8
        block_rows = min(target_rows, half)
    rows_padded = pl.cdiv(rows8, block_rows) * block_rows
    num_blocks = rows_padded // block_rows

    kernel = functools.partial(_pe_flat_kernel, group=group, block_rows=block_rows)

    cost = pl.CostEstimate(
        flops=3 * rows_padded * W,
        transcendentals=2 * rows_padded * W,
        bytes_accessed=rows_padded * W * 4 + num_blocks * 3 * W * 4,
    )

    flat = pl.pallas_call(
        kernel,
        out_shape=jax.ShapeDtypeStruct((rows_padded, W), jnp.float32),
        grid=(num_blocks,),
        in_specs=[pl.BlockSpec((3, W), lambda i: (0, 0))],
        out_specs=pl.BlockSpec((block_rows, W), lambda i: (i, 0)),
        compiler_params=pltpu.CompilerParams(
            dimension_semantics=("parallel",)),
        cost_estimate=cost,
    )(cols)

    # Row-major unflatten to (positions, dim), trim padding rows.
    pe = flat.reshape(rows_padded * group, dim)[:max_len]
    return pe


def positional_embedding(x, dim, max_len):
    """Pallas equivalent of PositionalEmbedding(max_len, dim).forward(x).

    x: (batch, seq_len) array (values unused, only shape matters).
    Returns: (batch, seq_len, dim) float32.
    """
    batch, seq_len = x.shape
    assert seq_len <= max_len, "seq_len must not exceed max_len"
    assert dim % 2 == 0, "dim must be even (as required by the PyTorch module)"

    pe = _pe_table(dim, max_len)          # cached buffer, kernel runs once per (dim, max_len)
    # TODO(synk): nn.Dropout is declared in __init__ but never applied in forward,
    # so it is intentionally omitted here.
    # Batch "repeat" stays a lazy broadcast; XLA fuses it into the consumer.
    return jnp.broadcast_to(pe[None, :seq_len, :], (batch, seq_len, dim))


def _reference(x, dim, max_len):
    """Pure-JAX reference mirroring the PyTorch buffer construction."""
    position = jnp.arange(0, max_len, dtype=jnp.float32)[:, None]
    div_term = jnp.exp(
        jnp.arange(0, dim, 2, dtype=jnp.float32) * (-math.log(10000.0) / dim)
    )
    pe = jnp.zeros((max_len, dim), jnp.float32)
    pe = pe.at[:, 0::2].set(jnp.sin(position * div_term))
    pe = pe.at[:, 1::2].set(jnp.cos(position * div_term))
    batch, seq_len = x.shape
    return jnp.broadcast_to(pe[:seq_len, :], (batch, seq_len, dim))


if __name__ == "__main__":
    key = jax.random.PRNGKey(0)
    batch, seq_len = 2, 8
    max_len, dim = 16, 32

    # x: (batch, seq_len) — e.g. token ids; only its shape is consumed.
    x = jax.random.randint(key, (batch, seq_len), 0, 100, dtype=jnp.int32)

    out = positional_embedding(x, dim=dim, max_len=max_len)
    out = jax.block_until_ready(out)

    ref = _reference(x, dim=dim, max_len=max_len)
    assert out.shape == (batch, seq_len, dim)
    assert out.dtype == jnp.float32
    assert jnp.allclose(out, ref, atol=1e-5, rtol=1e-5)

    # Second call hits the lru_cache (no kernel launch on the hot path).
    out2 = jax.block_until_ready(positional_embedding(x, dim=dim, max_len=max_len))
    assert jnp.array_equal(out, out2)

    print("KERNEL_OK")
</pallas_src>

<mosaic_0001>
module attributes {stable_mosaic.version = 11 : i64} {
  func.func @_pe_flat_kernel(%arg0: i32, %arg1: memref<3x128xf32, #tpu.memory_space<vmem>>, %arg2: memref<8x128xf32, #tpu.memory_space<vmem>>) attributes {dimension_semantics = [#tpu.dimension_semantics<parallel>], iteration_bounds = array<i64: 1>, scalar_prefetch = 0 : i64, scratch_operands = 0 : i64, tpu.core_type = #tpu.core_type<tc>, window_params = [{pipeline_mode = #tpu.pipeline_mode<synchronous>, transform_indices = @transform_0, window_bounds = array<i64: 3, 128>}, {transform_indices = @transform_1, window_bounds = array<i64: 8, 128>}]} {
    %c0 = arith.constant 0 : index
    %c0_0 = arith.constant 0 : index
    %0 = vector.load %arg1[%c0, %c0_0] : memref<3x128xf32, #tpu.memory_space<vmem>>, vector<3x128xf32>
    %1 = vector.extract_strided_slice %0 {offsets = [0, 0], sizes = [1, 128], strides = [1, 1]} : vector<3x128xf32> to vector<1x128xf32>
    %2 = vector.extract_strided_slice %0 {offsets = [1, 0], sizes = [1, 128], strides = [1, 1]} : vector<3x128xf32> to vector<1x128xf32>
    %3 = vector.extract_strided_slice %0 {offsets = [2, 0], sizes = [1, 128], strides = [1, 1]} : vector<3x128xf32> to vector<1x128xf32>
    %c8_i32 = arith.constant 8 : i32
    %4 = arith.muli %arg0, %c8_i32 : i32
    %5 = tpu.iota {dimensions = array<i32: 0>} : vector<8x1xi32>
    %6 = vector.broadcast %4 : i32 to vector<8x1xi32>
    %7 = arith.addi %5, %6 : vector<8x1xi32>
    %c4_i32 = arith.constant 4 : i32
    %8 = vector.broadcast %c4_i32 : i32 to vector<8x1xi32>
    %9 = arith.muli %7, %8 : vector<8x1xi32>
    %10 = arith.sitofp %9 : vector<8x1xi32> to vector<8x1xf32>
    %11 = vector.broadcast %10 : vector<8x1xf32> to vector<8x128xf32>
    %12 = vector.broadcast %2 : vector<1x128xf32> to vector<8x128xf32>
    %13 = arith.addf %11, %12 : vector<8x128xf32>
    %14 = vector.broadcast %1 : vector<1x128xf32> to vector<8x128xf32>
    %15 = arith.mulf %13, %14 : vector<8x128xf32>
    %cst = arith.constant 5.000000e-01 : f32
    %16 = vector.broadcast %cst : f32 to vector<1x128xf32>
    %17 = arith.cmpf ogt, %3, %16 : vector<1x128xf32>
    %18 = math.cos %15 : vector<8x128xf32>
    %19 = math.sin %15 : vector<8x128xf32>
    %20 = vector.shape_cast %17 : vector<1x128xi1> to vector<1x128xi1>
    %21 = vector.broadcast %20 : vector<1x128xi1> to vector<8x128xi1>
    %22 = arith.select %21, %18, %19 : vector<8x128xi1>, vector<8x128xf32>
    %c0_1 = arith.constant 0 : index
    %c0_2 = arith.constant 0 : index
    %23 = vector.load %arg2[%c0_1, %c0_2] : memref<8x128xf32, #tpu.memory_space<vmem>>, vector<8x128xf32>
    tpu.vector_store %arg2[%c0_1, %c0_2], %22 {strides = array<i32>} : memref<8x128xf32, #tpu.memory_space<vmem>>, vector<8x128xf32>,
    return
  }
  func.func @transform_0(%arg0: i32) -> (i32, i32) {
    %c0_i32 = arith.constant 0 : i32
    %c0_i32_0 = arith.constant 0 : i32
    %c0_i32_1 = arith.constant 0 : i32
    return %c0_i32, %c0_i32_0 : i32, i32
  }
  func.func @transform_1(%arg0: i32) -> (i32, i32) {
    %c0_i32 = arith.constant 0 : i32
    %c0_i32_0 = arith.constant 0 : i32
    return %arg0, %c0_i32 : i32, i32
  }
}

</mosaic_0001>

<llo_original>
// kernel: tpu_custom_call.1
$region0: #{tpu_custom_call.1}
  #allocation0 [shape = 'u32[]', space=smem, size = 0x4, offset = 0x4, fixed_abs, tag = 'smem constant byte address 0x4 - core index']
  #allocation1 [shape = 'u32[144,128]{1,0:T(1,128)}', space=vmem, size = 0x12000, scoped, tag = 'internal scratch']
  %s0 = inlined_call_operand.hbm [shape: f32[3,128], index: 0, kind: input, shape index: {}]
  %s1 = inlined_call_operand.hbm [shape: f32[8,128], index: 1, kind: output, shape index: {}]
  %s2 = sld [smem:[#allocation0]]
  $region18: #{tpu_custom_call.1} parent=0
    _
  %s4 = ssub.s32 1, %s2
  %s5 = scalar_select 0, %s4, %s2
  $region1: #{tpu_custom_call.1} parent=0
    #allocation2 [shape = 'u8[2048]{0}', space=vmem, size = 0x800, scoped, tag = 'input window, operand 0, single buffered']
    #allocation3 [shape = 's32[1]{0}', space=sflag, size = 0x4, scoped, tag = 'scoped memory for tpu_custom_call.1']
    #allocation4 [shape = 's32[1]{0}', space=sflag, size = 0x4, scoped, tag = 'scoped memory for tpu_custom_call.1']
    #allocation5 [shape = 'u8[4096]{0}', space=vmem, size = 0x1000, scoped, tag = 'output window, operand 0, single buffered']
    %6 = vsyncpa [#allocation3], 0
    %7 = vsyncpa [#allocation4], 0
    // Predicated region
    $region2: #{tpu_custom_call.1} parent=1 // pred_check
      _
    $region3: #{tpu_custom_call.1} parent=1 // pred_check_branch
      %9 = sbr.rel (0) target = $region5
    $region4: #{tpu_custom_call.1} parent=1 // pred_region
      %s11 = ssub.s32 64, 64
      %12 = vsyncadd [#allocation3], %s11
      %s14 = sshll.u32 [#allocation2], 4
      %s15 = int_to_ptr.vmem [resolvable:$true] %s14
      %17 = dma.hbm_to_vmem [thread:$0]  %s0, 64, %s15, [#allocation3]
    $region5: #{tpu_custom_call.1} parent=1 // pred_fallthru
      _
    // Predicated region
    $region6: #{tpu_custom_call.1} parent=1 // pred_check
      _
    $region7: #{tpu_custom_call.1} parent=1 // pred_check_branch
      %19 = sbr.rel (0) target = $region9
    $region8: #{tpu_custom_call.1} parent=1 // pred_region
      %20 = dma.done [#allocation3], 64
    $region9: #{tpu_custom_call.1} parent=1 // pred_fallthru
      _
    %v21 = vld [vmem:[#allocation2] sm:$0x7]
    %s22 = smul.u32 0, 8
    %v23 = vlaneseq
    %v24 = vshrl.u32 %v23, 7
    %v25 = vstv %s22
    %v26 = vadd.s32 %v24, %v25
    %v27 = vmul.u32 %v26, 4
    %v28 = vcvt.s32.f32 %v27
    %v29 = vlaneseq
    %v30 = vshrl.u32 %v29, 7
    %v31 = vsub.s32 1, %v30
    %v32 = vrot.slane %v21, %v31
    %v33 = vadd.f32 %v28, %v32
    %v34 = vlaneseq
    %v35 = vshrl.u32 %v34, 7
    %v36 = vsub.s32 0, %v35
    %v37 = vrot.slane %v21, %v36
    %v38 = vmul.f32 %v33, %v37
    %vm39 = vcmp.gt.f32.partialorder %v21, 0.5
    %v40 = vand.u32 2147483647, %v38
    %vm41 = vcmp.le.f32.partialorder %v40, 0.7853982
    %vm42 = vcmp.lt.s32.totalorder %v38, 0
    %v43 = vand.u32 %v38, 2139095040
    %v44 = vshrl.u32 %v43, 23
    %v45 = vsub.s32 %v44, 127
    %v46 = vand.u32 2147483647, %v38
    %v47 = vand.u32 %v46, 8388607
    %v48 = vor.u32 %v47, 8388608
    %v49 = vsub.s32 0, %v48
    %v50 = vadd.s32 %v45, 1
    %vm51 = vcmp.gt.s32.totalorder %v50, 0
    %v52 = vsel %vm51, %v50, 0
    %v53 = vshrl.u32 %v52, 5
    %v54 = vand.u32 %v52, 31
    %v55 = vsub.s32 32, %v54
    %v56 = vshrl.u32 683565275, %v55
    %v57 = vshll.u32 683565275, %v54
    %v58 = vshrl.u32 2475754826, %v55
    %v59 = vor.u32 %v57, %v58
    %v60 = vshll.u32 2475754826, %v54
    %v61 = vshrl.u32 2131351028, %v55
    %v62 = vor.u32 %v60, %v61
    %v63 = vshll.u32 2131351028, %v54
    %v64 = vshrl.u32 2102212464, %v55
    %v65 = vor.u32 %v63, %v64
    %v66 = vshll.u32 2102212464, %v54
    %v67 = vshrl.u32 920167782, %v55
    %v68 = vor.u32 %v66, %v67
    %v69 = vshll.u32 920167782, %v54
    %v70 = vshrl.u32 1326507024, %v55
    %v71 = vor.u32 %v69, %v70
    %vm72 = vcmp.lt.s32.totalorder %v53, 1
    %vm73 = vcmp.lt.s32.totalorder %v53, 2
    %vm74 = vcmp.lt.s32.totalorder %v53, 3
    %vm75 = vcmp.lt.s32.totalorder %v53, 4
    %v76 = vsel %vm72, %v56, %v59
    %v77 = vsel %vm75, %v65, 2102212464
    %v78 = vsel %vm74, %v62, %v77
    %v79 = vsel %vm73, %v76, %v78
    %v80 = vsel %vm72, %v59, %v62
    %v81 = vsel %vm75, %v68, 920167782
    %v82 = vsel %vm74, %v65, %v81
    %v83 = vsel %vm73, %v80, %v82
    %v84 = vsel %vm72, %v62, %v65
    %v85 = vsel %vm75, %v71, 1326507024
    %v86 = vsel %vm74, %v68, %v85
    %v87 = vsel %vm73, %v84, %v86
    %v88 = vshll.u32 %v48, 8
    %v89 = vmul.u32.u64.compose %v88, %v87
    %v90 = vextract.low.u32 %v89
    %v91 = vextract.high.u32 %v89
    %v92 = vmul.u32.u64.compose %v88, %v83
    %v93 = vextract.low.u32 %v92
    %v94 = vextract.high.u32 %v92
    %v95 = vmul.u32 %v88, %v79
    %v96 = vadd.s32 %v91, %v93
    %vm97 = vc.u32 %v91, %v93
    %v98 = vadd.s32 %v94, 1
    %v99 = vsel %vm97, %v98, %v94
    %v100 = vadd.s32 %v95, %v99
    %v101 = vadd.s32 %v100, 536870912
    %v102 = vshrl.u32 %v101, 30
    %v103 = vshll.u32 %v102, 30
    %v104 = vsub.s32 %v100, %v103
    %vm105 = vcmp.lt.s32.totalorder %v104, 0
    %v106 = vsub.s32 0, %v104
    %v107 = vsel %vm105, %v106, %v104
    %v108 = vclz %v107
    %v109 = vsub.s32 %v108, 2
    %vm110 = vcmp.gt.s32.totalorder 0, %v109
    %v111 = vsel %vm110, 0, %v109
    %v112 = vsub.s32 32, %v111
    %v113 = vshll.u32 %v104, %v111
    %v114 = vshrl.u32 %v96, %v112
    %v115 = vor.u32 %v113, %v114
    %v116 = vsub.s32 4294967266, %v111
    %v117 = vadd.s32 %v116, 127
    %v118 = vshll.u32 %v117, 23
    %v119 = vor.u32 4788187, %v118
    %v120 = vand.u32 2147483647, %v119
    %v122 = vcvt.s32.f32 %v115
    %v123 = vmul.f32 %v122, %v120
    %v124 = vxor.u32 %v123, 2147483648
    %v125 = vsel %vm42, %v124, %v123
    %v126 = vsub.s32 4, %v102
    %v127 = vsel %vm42, %v126, %v102
    %v128 = vsel %vm41, %v38, %v125
    %v129 = vsel %vm41, 0, %v127
    %v130 = vcosq.f32.pop %v128
    %v131 = vsinq.f32.pop %v128
    %vm132 = vweird.f32 %v38
    %v133 = vand.u32 %v129, 3
    %vm134 = vcmp.lt.s32.totalorder %v133, 2
    %vm135 = vcmp.eq.s32.totalorder %v133, 0
    %v136 = vxor.u32 %v131, 2147483648
    %v137 = vsel %vm135, %v130, %v136
    %vm138 = vcmp.eq.s32.totalorder %v133, 2
    %v139 = vxor.u32 %v130, 2147483648
    %v140 = vsel %vm138, %v139, %v131
    %v141 = vsel %vm134, %v137, %v140
    %v142 = vsel %vm132, nan, %v141
    %v143 = vand.u32 2147483647, %v38
    %vm144 = vcmp.le.f32.partialorder %v143, 0.7853982
    %vm145 = vcmp.lt.s32.totalorder %v38, 0
    %v146 = vand.u32 %v38, 2139095040
    %v147 = vshrl.u32 %v146, 23
    %v148 = vsub.s32 %v147, 127
    %v149 = vand.u32 2147483647, %v38
    %v150 = vand.u32 %v149, 8388607
    %v151 = vor.u32 %v150, 8388608
    %v152 = vsub.s32 0, %v151
    %v153 = vadd.s32 %v148, 1
    %vm154 = vcmp.gt.s32.totalorder %v153, 0
    %v155 = vsel %vm154, %v153, 0
    %v156 = vshrl.u32 %v155, 5
    %v157 = vand.u32 %v155, 31
    %v158 = vsub.s32 32, %v157
    %v159 = vshrl.u32 683565275, %v158
    %v160 = vshll.u32 683565275, %v157
    %v161 = vshrl.u32 2475754826, %v158
    %v162 = vor.u32 %v160, %v161
    %v163 = vshll.u32 2475754826, %v157
    %v164 = vshrl.u32 2131351028, %v158
    %v165 = vor.u32 %v163, %v164
    %v166 = vshll.u32 2131351028, %v157
    %v167 = vshrl.u32 2102212464, %v158
    %v168 = vor.u32 %v166, %v167
    %v169 = vshll.u32 2102212464, %v157
    %v170 = vshrl.u32 920167782, %v158
    %v171 = vor.u32 %v169, %v170
    %v172 = vshll.u32 920167782, %v157
    %v173 = vshrl.u32 1326507024, %v158
    %v174 = vor.u32 %v172, %v173
    %vm175 = vcmp.lt.s32.totalorder %v156, 1
    %vm176 = vcmp.lt.s32.totalorder %v156, 2
    %vm177 = vcmp.lt.s32.totalorder %v156, 3
    %vm178 = vcmp.lt.s32.totalorder %v156, 4
    %v179 = vsel %vm175, %v159, %v162
    %v180 = vsel %vm178, %v168, 2102212464
    %v181 = vsel %vm177, %v165, %v180
    %v182 = vsel %vm176, %v179, %v181
    %v183 = vsel %vm175, %v162, %v165
    %v184 = vsel %vm178, %v171, 920167782
    %v185 = vsel %vm177, %v168, %v184
    %v186 = vsel %vm176, %v183, %v185
    %v187 = vsel %vm175, %v165, %v168
    %v188 = vsel %vm178, %v174, 1326507024
    %v189 = vsel %vm177, %v171, %v188
    %v190 = vsel %vm176, %v187, %v189
    %v191 = vshll.u32 %v151, 8
    %v192 = vmul.u32.u64.compose %v191, %v190
    %v193 = vextract.low.u32 %v192
    %v194 = vextract.high.u32 %v192
    %v195 = vmul.u32.u64.compose %v191, %v186
    %v196 = vextract.low.u32 %v195
    %v197 = vextract.high.u32 %v195
    %v198 = vmul.u32 %v191, %v182
    %v199 = vadd.s32 %v194, %v196
    %vm200 = vc.u32 %v194, %v196
    %v201 = vadd.s32 %v197, 1
    %v202 = vsel %vm200, %v201, %v197
    %v203 = vadd.s32 %v198, %v202
    %v204 = vadd.s32 %v203, 536870912
    %v205 = vshrl.u32 %v204, 30
    %v206 = vshll.u32 %v205, 30
    %v207 = vsub.s32 %v203, %v206
    %vm208 = vcmp.lt.s32.totalorder %v207, 0
    %v209 = vsub.s32 0, %v207
    %v210 = vsel %vm208, %v209, %v207
    %v211 = vclz %v210
    %v212 = vsub.s32 %v211, 2
    %vm213 = vcmp.gt.s32.totalorder 0, %v212
    %v214 = vsel %vm213, 0, %v212
    %v215 = vsub.s32 32, %v214
    %v216 = vshll.u32 %v207, %v214
    %v217 = vshrl.u32 %v199, %v215
    %v218 = vor.u32 %v216, %v217
    %v219 = vsub.s32 4294967266, %v214
    %v220 = vadd.s32 %v219, 127
    %v221 = vshll.u32 %v220, 23
    %v222 = vor.u32 4788187, %v221
    %v223 = vand.u32 2147483647, %v222
    %v225 = vcvt.s32.f32 %v218
    %v226 = vmul.f32 %v225, %v223
    %v227 = vxor.u32 %v226, 2147483648
    %v228 = vsel %vm145, %v227, %v226
    %v229 = vsub.s32 4, %v205
    %v230 = vsel %vm145, %v229, %v205
    %v231 = vsel %vm144, %v38, %v228
    %v232 = vsel %vm144, 0, %v230
    %v233 = vcosq.f32.pop %v231
    %v234 = vsinq.f32.pop %v231
    %vm235 = vweird.f32 %v38
    %v236 = vadd.s32 %v232, 3
    %v237 = vand.u32 %v236, 3
    %vm238 = vcmp.lt.s32.totalorder %v237, 2
    %vm239 = vcmp.eq.s32.totalorder %v237, 0
    %v240 = vxor.u32 %v234, 2147483648
    %v241 = vsel %vm239, %v233, %v240
    %vm242 = vcmp.eq.s32.totalorder %v237, 2
    %v243 = vxor.u32 %v233, 2147483648
    %v244 = vsel %vm242, %v243, %v234
    %v245 = vsel %vm238, %v241, %v244
    %v246 = vsel %vm235, nan, %v245
    %v247 = vsel %vm39, 1, 0
    %v248 = vlaneseq
    %v249 = vshrl.u32 %v248, 7
    %v250 = vsub.s32 2, %v249
    %v251 = vrot.slane %v247, %v250
    %vm252 = vcmp.eq.s32.totalorder %v251, 1
    %v253 = vsel %vm252, %v142, %v246
    %254 = vst [vmem:[#allocation5] sm:$0xff] %v253
    // Predicated region
    $region10: #{tpu_custom_call.1} parent=1 // pred_check
      _
    $region11: #{tpu_custom_call.1} parent=1 // pred_check_branch
      %256 = sbr.rel (0) target = $region13
    $region12: #{tpu_custom_call.1} parent=1 // pred_region
      %s258 = ssub.s32 128, 128
      %259 = vsyncadd [#allocation4], %s258
      %s261 = sshll.u32 [#allocation5], 4
      %s262 = int_to_ptr.vmem [resolvable:$true] %s261
      %264 = dma.vmem_to_hbm [thread:$0]  %s262, 128, %s1, [#allocation4]
    $region13: #{tpu_custom_call.1} parent=1 // pred_fallthru
      _
    // Predicated region
    $region14: #{tpu_custom_call.1} parent=1 // pred_check
      _
    $region15: #{tpu_custom_call.1} parent=1 // pred_check_branch
      %266 = sbr.rel (0) target = $region17
    $region16: #{tpu_custom_call.1} parent=1 // pred_region
      %267 = dma.done [#allocation4], 128
    $region17: #{tpu_custom_call.1} parent=1 // pred_fallthru
      _
    %268 = vsyncpa [#allocation3], 1
    %269 = vsyncpa [#allocation4], 1

</llo_original>
